<compile_context>
chip_gen: v6e
topology: v6e:2x2x1
jax: 0.10.0
libtpu: 0.0.40
codegen_flags: <defaults>
</compile_context>

<pallas_src>
import jax
import jax.numpy as jnp
import numpy as np
from jax import lax
from jax.experimental import pallas as pl
from jax.experimental.pallas import tpu as pltpu

_LANE = 128


def _round_up(x: int, m: int) -> int:
    return ((x + m - 1) // m) * m


# ----------------------------------------------------------------------------
# Fused ACCEPT forward kernel:
#   op   = op_x @ W_op + b_op       (stand-in operational encoder)
#   ph   = ph_x @ W_ph + b_ph       (stand-in physical encoder)
#   op_n = op * (exp(logit_scale) * rsqrt(sum(op^2, dim=1)))
#   ph_n = ph *  rsqrt(sum(ph^2, dim=1))
#   logits_per_operational = op_n @ ph_n.T   (NT dot_general, MXU)
#   logits_per_physical    = ph_n @ op_n.T   (== logits_per_operational.T)
#
# TODO(synk): TemporalFusionTransformer / TimeSeriesTransformer internals are
#             external library models not defined in the module; replaced by
#             deterministic linear stand-in encoders.
# ----------------------------------------------------------------------------
def _accept_fused_kernel(scale_ref, opx_ref, wop_ref, bop_ref,
                         phx_ref, wph_ref, bph_ref,
                         lop_ref, lph_ref):
    # Stand-in linear encoders (features stay resident in VMEM / vregs).
    op = jnp.dot(opx_ref[...], wop_ref[...],
                 preferred_element_type=jnp.float32) + bop_ref[...]
    ph = jnp.dot(phx_ref[...], wph_ref[...],
                 preferred_element_type=jnp.float32) + bph_ref[...]

    # L2 normalization along dim=1.  exp(logit_scale) is folded into the
    # operational normalization factor so only a [B,D] tensor is scaled
    # (never the [B,B] logits).  rsqrt goes to the EUP (free slot); the eps
    # guard keeps padded rows finite.
    logit_scale = jnp.exp(scale_ref[0, 0])
    op_inv = lax.rsqrt(jnp.maximum(jnp.sum(op * op, axis=1, keepdims=True),
                                   1e-30))
    ph_inv = lax.rsqrt(jnp.maximum(jnp.sum(ph * ph, axis=1, keepdims=True),
                                   1e-30))
    op_n = op * (op_inv * logit_scale)
    ph_n = ph * ph_inv

    # NT matmuls: contract the feature dim (dim 1) of both operands directly;
    # no materialized transpose.  logits_per_physical is a second MXU matmul
    # rather than an XLU transpose of the first result.
    dn = (((1,), (1,)), ((), ()))
    lop_ref[...] = lax.dot_general(op_n, ph_n, dn,
                                   preferred_element_type=jnp.float32)
    lph_ref[...] = lax.dot_general(ph_n, op_n, dn,
                                   preferred_element_type=jnp.float32)


@jax.jit
def accept_forward(op_x, ph_x, params):
    """op_x: [B, T_op], ph_x: [B, T_ph] float32.

    Returns (logits_per_operational, logits_per_physical), each [B, B] f32.
    """
    B, T_op = op_x.shape
    _, T_ph = ph_x.shape
    D = params["w_op"].shape[1]

    # Lane-dense outputs: pad the batch to a multiple of 128 so both [B,B]
    # logits stores are full unmasked vst's; the padded rows/cols are sliced
    # off afterwards (they never contaminate real entries — the contraction
    # in every matmul is over the feature/time dim only).
    Bp = _round_up(max(B, _LANE), _LANE)
    op_xp = jnp.pad(op_x.astype(jnp.float32), ((0, Bp - B), (0, 0)))
    ph_xp = jnp.pad(ph_x.astype(jnp.float32), ((0, Bp - B), (0, 0)))

    scale_arr = jnp.asarray(params["logit_scale"], jnp.float32).reshape(1, 1)

    lop, lph = pl.pallas_call(
        _accept_fused_kernel,
        out_shape=(
            jax.ShapeDtypeStruct((Bp, Bp), jnp.float32),
            jax.ShapeDtypeStruct((Bp, Bp), jnp.float32),
        ),
        in_specs=[
            pl.BlockSpec(memory_space=pltpu.SMEM),        # logit_scale scalar
            pl.BlockSpec((Bp, T_op), lambda: (0, 0)),     # operational series
            pl.BlockSpec((T_op, D), lambda: (0, 0)),      # W_op
            pl.BlockSpec((1, D), lambda: (0, 0)),         # b_op
            pl.BlockSpec((Bp, T_ph), lambda: (0, 0)),     # physical series
            pl.BlockSpec((T_ph, D), lambda: (0, 0)),      # W_ph
            pl.BlockSpec((1, D), lambda: (0, 0)),         # b_ph
        ],
        out_specs=(
            pl.BlockSpec((Bp, Bp), lambda: (0, 0)),
            pl.BlockSpec((Bp, Bp), lambda: (0, 0)),
        ),
        compiler_params=pltpu.CompilerParams(vmem_limit_bytes=64 << 20),
    )(scale_arr, op_xp, params["w_op"], params["b_op"],
      ph_xp, params["w_ph"], params["b_ph"])

    return lop[:B, :B], lph[:B, :B]


def _reference_forward(op_x, ph_x, params):
    op = op_x @ params["w_op"] + params["b_op"]
    ph = ph_x @ params["w_ph"] + params["b_ph"]
    op = op / jnp.linalg.norm(op, axis=1, keepdims=True)
    ph = ph / jnp.linalg.norm(ph, axis=1, keepdims=True)
    logits = jnp.exp(params["logit_scale"]) * op @ ph.T
    return logits, logits.T


if __name__ == "__main__":
    # Small synthetic shapes consistent with the module:
    #   batch=8 (contrastive pairs), embed_dim=32,
    #   operational seq len=24 (hidden_size=24 in TFT), physical seq len=16.
    B, T_OP, T_PH, EMBED = 8, 24, 16, 32

    key = jax.random.PRNGKey(0)
    k1, k2, k3, k4, k5, k6 = jax.random.split(key, 6)

    params = {
        "w_op": 0.1 * jax.random.normal(k1, (T_OP, EMBED), jnp.float32),
        "b_op": 0.01 * jax.random.normal(k2, (1, EMBED), jnp.float32),
        "w_ph": 0.1 * jax.random.normal(k3, (T_PH, EMBED), jnp.float32),
        "b_ph": 0.01 * jax.random.normal(k4, (1, EMBED), jnp.float32),
        # nn.Parameter(torch.ones([]) * np.log(1 / 0.07))
        "logit_scale": jnp.asarray(np.log(1.0 / 0.07), jnp.float32),
    }

    op_x = jax.random.normal(k5, (B, T_OP), jnp.float32)
    ph_x = jax.random.normal(k6, (B, T_PH), jnp.float32)

    logits_op, logits_ph = accept_forward(op_x, ph_x, params)
    jax.block_until_ready((logits_op, logits_ph))

    ref_op, ref_ph = _reference_forward(op_x, ph_x, params)
    np.testing.assert_allclose(np.asarray(logits_op), np.asarray(ref_op),
                               rtol=1e-5, atol=1e-5)
    np.testing.assert_allclose(np.asarray(logits_ph), np.asarray(ref_ph),
                               rtol=1e-5, atol=1e-5)
    assert logits_op.shape == (B, B) and logits_ph.shape == (B, B)

    print("KERNEL_OK")
</pallas_src>

<mosaic_0001>
module attributes {stable_mosaic.version = 11 : i64} {
  func.func @_accept_fused_kernel(%arg0: memref<1x1xf32, #tpu.memory_space<smem>>, %arg1: memref<128x24xf32, #tpu.memory_space<vmem>>, %arg2: memref<24x32xf32, #tpu.memory_space<vmem>>, %arg3: memref<1x32xf32, #tpu.memory_space<vmem>>, %arg4: memref<128x16xf32, #tpu.memory_space<vmem>>, %arg5: memref<16x32xf32, #tpu.memory_space<vmem>>, %arg6: memref<1x32xf32, #tpu.memory_space<vmem>>, %arg7: memref<128x128xf32, #tpu.memory_space<vmem>>, %arg8: memref<128x128xf32, #tpu.memory_space<vmem>>) attributes {dimension_semantics = [], scalar_prefetch = 0 : i64, scratch_operands = 0 : i64, tpu.core_type = #tpu.core_type<tc>} {
    %c0 = arith.constant 0 : index
    %c0_0 = arith.constant 0 : index
    %0 = vector.load %arg1[%c0, %c0_0] : memref<128x24xf32, #tpu.memory_space<vmem>>, vector<128x24xf32>
    %c0_1 = arith.constant 0 : index
    %c0_2 = arith.constant 0 : index
    %1 = vector.load %arg2[%c0_1, %c0_2] : memref<24x32xf32, #tpu.memory_space<vmem>>, vector<24x32xf32>
    %cst = arith.constant dense<0.000000e+00> : vector<128x32xf32>
    %2 = tpu.matmul %0, %1, %cst {dimension_numbers = #tpu.dot_dimension_numbers<[1], [0], [0], [1], [0, 0, 1, 1], [], []>} : vector<128x24xf32>, vector<24x32xf32>, vector<128x32xf32> -> vector<128x32xf32>
    %c0_3 = arith.constant 0 : index
    %c0_4 = arith.constant 0 : index
    %3 = vector.load %arg3[%c0_3, %c0_4] : memref<1x32xf32, #tpu.memory_space<vmem>>, vector<1x32xf32>
    %4 = vector.broadcast %3 : vector<1x32xf32> to vector<128x32xf32>
    %5 = arith.addf %2, %4 : vector<128x32xf32>
    %c0_5 = arith.constant 0 : index
    %c0_6 = arith.constant 0 : index
    %6 = vector.load %arg4[%c0_5, %c0_6] : memref<128x16xf32, #tpu.memory_space<vmem>>, vector<128x16xf32>
    %c0_7 = arith.constant 0 : index
    %c0_8 = arith.constant 0 : index
    %7 = vector.load %arg5[%c0_7, %c0_8] : memref<16x32xf32, #tpu.memory_space<vmem>>, vector<16x32xf32>
    %cst_9 = arith.constant dense<0.000000e+00> : vector<128x32xf32>
    %8 = tpu.matmul %6, %7, %cst_9 {dimension_numbers = #tpu.dot_dimension_numbers<[1], [0], [0], [1], [0, 0, 1, 1], [], []>} : vector<128x16xf32>, vector<16x32xf32>, vector<128x32xf32> -> vector<128x32xf32>
    %c0_10 = arith.constant 0 : index
    %c0_11 = arith.constant 0 : index
    %9 = vector.load %arg6[%c0_10, %c0_11] : memref<1x32xf32, #tpu.memory_space<vmem>>, vector<1x32xf32>
    %10 = vector.broadcast %9 : vector<1x32xf32> to vector<128x32xf32>
    %11 = arith.addf %8, %10 : vector<128x32xf32>
    %c0_12 = arith.constant 0 : index
    %c0_13 = arith.constant 0 : index
    %12 = memref.load %arg0[%c0_12, %c0_13] : memref<1x1xf32, #tpu.memory_space<smem>>
    %13 = math.exp %12 : f32
    %14 = arith.mulf %5, %5 : vector<128x32xf32>
    %cst_14 = arith.constant dense<0.000000e+00> : vector<128xf32>
    %15 = vector.multi_reduction <add>, %14, %cst_14 [1] : vector<128x32xf32> to vector<128xf32>
    %16 = vector.shape_cast %15 : vector<128xf32> to vector<128x1xf32>
    %cst_15 = arith.constant 1.000000e-30 : f32
    %17 = vector.broadcast %cst_15 : f32 to vector<128x1xf32>
    %18 = arith.maximumf %16, %17 : vector<128x1xf32>
    %19 = math.rsqrt %18 : vector<128x1xf32>
    %20 = arith.mulf %11, %11 : vector<128x32xf32>
    %cst_16 = arith.constant dense<0.000000e+00> : vector<128xf32>
    %21 = vector.multi_reduction <add>, %20, %cst_16 [1] : vector<128x32xf32> to vector<128xf32>
    %22 = vector.shape_cast %21 : vector<128xf32> to vector<128x1xf32>
    %cst_17 = arith.constant 1.000000e-30 : f32
    %23 = vector.broadcast %cst_17 : f32 to vector<128x1xf32>
    %24 = arith.maximumf %22, %23 : vector<128x1xf32>
    %25 = math.rsqrt %24 : vector<128x1xf32>
    %26 = vector.broadcast %13 : f32 to vector<128x1xf32>
    %27 = arith.mulf %19, %26 : vector<128x1xf32>
    %28 = vector.broadcast %27 : vector<128x1xf32> to vector<128x32xf32>
    %29 = arith.mulf %5, %28 : vector<128x32xf32>
    %30 = vector.broadcast %25 : vector<128x1xf32> to vector<128x32xf32>
    %31 = arith.mulf %11, %30 : vector<128x32xf32>
    %cst_18 = arith.constant dense<0.000000e+00> : vector<128x128xf32>
    %32 = tpu.matmul %29, %31, %cst_18 {dimension_numbers = #tpu.dot_dimension_numbers<[1], [1], [0], [0], [0, 0, 1, 0], [], []>} : vector<128x32xf32>, vector<128x32xf32>, vector<128x128xf32> -> vector<128x128xf32>
    %c0_19 = arith.constant 0 : index
    %c0_20 = arith.constant 0 : index
    %33 = vector.load %arg7[%c0_19, %c0_20] : memref<128x128xf32, #tpu.memory_space<vmem>>, vector<128x128xf32>
    tpu.vector_store %arg7[%c0_19, %c0_20], %32 {strides = array<i32>} : memref<128x128xf32, #tpu.memory_space<vmem>>, vector<128x128xf32>,
    %cst_21 = arith.constant dense<0.000000e+00> : vector<128x128xf32>
    %34 = tpu.matmul %31, %29, %cst_21 {dimension_numbers = #tpu.dot_dimension_numbers<[1], [1], [0], [0], [0, 0, 1, 0], [], []>} : vector<128x32xf32>, vector<128x32xf32>, vector<128x128xf32> -> vector<128x128xf32>
    %c0_22 = arith.constant 0 : index
    %c0_23 = arith.constant 0 : index
    %35 = vector.load %arg8[%c0_22, %c0_23] : memref<128x128xf32, #tpu.memory_space<vmem>>, vector<128x128xf32>
    tpu.vector_store %arg8[%c0_22, %c0_23], %34 {strides = array<i32>} : memref<128x128xf32, #tpu.memory_space<vmem>>, vector<128x128xf32>,
    return
  }
}

</mosaic_0001>

<llo_original>
// kernel: accept_forward.1
$region0: #{accept_forward.1}
  #allocation0 [shape = 'u32[]', space=smem, size = 0x4, offset = 0x4, fixed_abs, tag = 'smem constant byte address 0x4 - core index']
  #allocation1 [shape = 'u32[144,128]{1,0:T(1,128)}', space=vmem, size = 0x12000, scoped, tag = 'internal scratch']
  #allocation2 [shape = 'f32[1,1]{1,0:T(1,128)S(6)}', space=smem, size = 0x200, scoped, tag = 'scoped memory for accept_forward.1']
  %s0 = inlined_call_operand.<no memory space> [shape: f32[1,1], index: 0, kind: input, shape index: {}]
  %s1 = inlined_call_operand.vmem [shape: f32[128,24], index: 1, kind: input, shape index: {}]
  %s2 = inlined_call_operand.vmem [shape: f32[24,32], index: 2, kind: input, shape index: {}]
  %s3 = inlined_call_operand.vmem [shape: f32[1,32], index: 3, kind: input, shape index: {}]
  %s4 = inlined_call_operand.vmem [shape: f32[128,16], index: 4, kind: input, shape index: {}]
  %s5 = inlined_call_operand.vmem [shape: f32[16,32], index: 5, kind: input, shape index: {}]
  %s6 = inlined_call_operand.vmem [shape: f32[1,32], index: 6, kind: input, shape index: {}]
  %s7 = inlined_call_operand.vmem [shape: f32[128,128], index: 7, kind: output, shape index: {0}]
  %s8 = inlined_call_operand.vmem [shape: f32[128,128], index: 8, kind: output, shape index: {1}]
  %9 = xla_tuple %s7, %s8
  %s10 = sld [smem:[#allocation0]]
  $region46: #{accept_forward.1} parent=0
    _
  %s12 = ssub.s32 1, %s10
  %s13 = scalar_select 0, %s12, %s10
  %14 = sst [smem:[#allocation2]] %s0
  // Predicated region
  $region2: #{accept_forward.1} parent=0 // pred_check
    _
  $region3: #{accept_forward.1} parent=0 // pred_check_branch
    %16 = sbr.rel (0) target = $region5
  $region4: #{accept_forward.1} parent=0 // pred_region
    _
  $region5: #{accept_forward.1} parent=0 // pred_fallthru
    _
  // Predicated region
  $region6: #{accept_forward.1} parent=0 // pred_check
    _
  $region7: #{accept_forward.1} parent=0 // pred_check_branch
    %18 = sbr.rel (0) target = $region9
  $region8: #{accept_forward.1} parent=0 // pred_region
    _
  $region9: #{accept_forward.1} parent=0 // pred_fallthru
    _
  // Predicated region
  $region10: #{accept_forward.1} parent=0 // pred_check
    _
  $region11: #{accept_forward.1} parent=0 // pred_check_branch
    %20 = sbr.rel (0) target = $region13
  $region12: #{accept_forward.1} parent=0 // pred_region
    _
  $region13: #{accept_forward.1} parent=0 // pred_fallthru
    _
  // Predicated region
  $region14: #{accept_forward.1} parent=0 // pred_check
    _
  $region15: #{accept_forward.1} parent=0 // pred_check_branch
    %22 = sbr.rel (0) target = $region17
  $region16: #{accept_forward.1} parent=0 // pred_region
    _
  $region17: #{accept_forward.1} parent=0 // pred_fallthru
    _
  // Predicated region
  $region18: #{accept_forward.1} parent=0 // pred_check
    _
  $region19: #{accept_forward.1} parent=0 // pred_check_branch
    %24 = sbr.rel (0) target = $region21
  $region20: #{accept_forward.1} parent=0 // pred_region
    _
  $region21: #{accept_forward.1} parent=0 // pred_fallthru
    _
  // Predicated region
  $region22: #{accept_forward.1} parent=0 // pred_check
    _
  $region23: #{accept_forward.1} parent=0 // pred_check_branch
    %26 = sbr.rel (0) target = $region25
  $region24: #{accept_forward.1} parent=0 // pred_region
    _
  $region25: #{accept_forward.1} parent=0 // pred_fallthru
    _
  // Predicated region
  $region26: #{accept_forward.1} parent=0 // pred_check
    _
  $region27: #{accept_forward.1} parent=0 // pred_check_branch
    %28 = sbr.rel (0) target = $region29
  $region28: #{accept_forward.1} parent=0 // pred_region
    _
  $region29: #{accept_forward.1} parent=0 // pred_fallthru
    _
  %v29 = vld [vmem:[%s1] sm:$0xff]
  %v30 = vld [vmem:[%s1 + $0x8] sm:$0xff]
  %v31 = vld [vmem:[%s1 + $0x10] sm:$0xff]
  %v32 = vld [vmem:[%s1 + $0x18] sm:$0xff]
  %v33 = vld [vmem:[%s1 + $0x20] sm:$0xff]
  %v34 = vld [vmem:[%s1 + $0x28] sm:$0xff]
  %v35 = vld [vmem:[%s1 + $0x30] sm:$0xff]
  %v36 = vld [vmem:[%s1 + $0x38] sm:$0xff]
  %v37 = vld [vmem:[%s1 + $0x40] sm:$0xff]
  %v38 = vld [vmem:[%s1 + $0x48] sm:$0xff]
  %v39 = vld [vmem:[%s1 + $0x50] sm:$0xff]
  %v40 = vld [vmem:[%s1 + $0x58] sm:$0xff]
  %v41 = vld [vmem:[%s1 + $0x60] sm:$0xff]
  %v42 = vld [vmem:[%s1 + $0x68] sm:$0xff]
  %v43 = vld [vmem:[%s1 + $0x70] sm:$0xff]
  %v44 = vld [vmem:[%s1 + $0x78] sm:$0xff]
  %v45 = vld [vmem:[%s2] sm:$0xff]
  %v46 = vld [vmem:[%s2 + $0x8] sm:$0xff]
  %v47 = vld [vmem:[%s2 + $0x10] sm:$0xff]
  %v48 = vld [vmem:[%s3] sm:$0x1]
  %v50 = vlaneseq
  %v51 = vshrl.u32 %v50, 7
  %v52 = vsub.s32 0, %v51
  %v53 = vrot.slane %v48, %v52
  %vm55 = vcmask 195584
  %v57 = vsel %vm55, %v29, 0
  %v60 = vsel %vm55, %v30, 0
  %v63 = vsel %vm55, %v31, 0
  %v66 = vsel %vm55, %v32, 0
  %v69 = vsel %vm55, %v33, 0
  %v72 = vsel %vm55, %v34, 0
  %v75 = vsel %vm55, %v35, 0
  %v78 = vsel %vm55, %v36, 0
  %v81 = vsel %vm55, %v37, 0
  %v84 = vsel %vm55, %v38, 0
  %v87 = vsel %vm55, %v39, 0
  %v90 = vsel %vm55, %v40, 0
  %v93 = vsel %vm55, %v41, 0
  %v96 = vsel %vm55, %v42, 0
  %v99 = vsel %vm55, %v43, 0
  %v102 = vsel %vm55, %v44, 0
  %104 = vmatprep.subr.mxu0 0.0
  %105 = vmatpush1.msra.mxu0 0.0
  %106 = vmatprep.subr.mxu0 0.0
  %107 = vmatpush1.msra.mxu0 0.0
  %108 = vmatprep.subr.mxu0 0.0
  %109 = vmatpush1.msra.mxu0 0.0
  %110 = vmatprep.subr.mxu0 0.0
  %111 = vmatpush1.msra.mxu0 0.0
  %112 = vmatprep.subr.mxu0 0.0
  %113 = vmatpush1.msra.mxu0 0.0
  %114 = vmatprep.subr.mxu0 0.0
  %115 = vmatpush1.msra.mxu0 0.0
  %116 = vmatprep.subr.mxu0 0.0
  %117 = vmatpush1.msra.mxu0 0.0
  %118 = vmatprep.subr.mxu0 0.0
  %119 = vmatpush1.msra.mxu0 0.0
  %120 = vmatprep.subr.mxu0 0.0
  %121 = vmatpush1.msra.mxu0 0.0
  %122 = vmatprep.subr.mxu0 0.0
  %123 = vmatpush1.msra.mxu0 0.0
  %124 = vmatprep.subr.mxu0 0.0
  %125 = vmatpush1.msra.mxu0 0.0
  %126 = vmatprep.subr.mxu0 0.0
  %127 = vmatpush1.msra.mxu0 0.0
  %128 = vmatprep.subr.mxu0 0.0
  %129 = vmatpush1.msra.mxu0 0.0
  %130 = vmatprep.subr.mxu0 0.0
  %131 = vmatpush1.msra.mxu0 %v47
  %132 = vmatprep.subr.mxu0 0.0
  %133 = vmatpush1.msra.mxu0 %v46
  %134 = vmatprep.subr.mxu0 0.0
  %135 = vmatpush1.msra.mxu0 %v45
  %136 = vmatprep.subr.mxu0 0.0
  %137 = vmatpush2.msra.mxu0 0.0
  %138 = vmatprep.subr.mxu0 0.0
  %139 = vmatpush2.msra.mxu0 0.0
  %140 = vmatprep.subr.mxu0 0.0
  %141 = vmatpush2.msra.mxu0 0.0
  %142 = vmatprep.subr.mxu0 0.0
  %143 = vmatpush2.msra.mxu0 0.0
  %144 = vmatprep.subr.mxu0 0.0
  %145 = vmatpush2.msra.mxu0 0.0
  %146 = vmatprep.subr.mxu0 0.0
  %147 = vmatpush2.msra.mxu0 0.0
  %148 = vmatprep.subr.mxu0 0.0
  %149 = vmatpush2.msra.mxu0 0.0
  %150 = vmatprep.subr.mxu0 0.0
  %151 = vmatpush2.msra.mxu0 0.0
  %152 = vmatprep.subr.mxu0 0.0
  %153 = vmatpush2.msra.mxu0 0.0
  %154 = vmatprep.subr.mxu0 0.0
  %155 = vmatpush2.msra.mxu0 0.0
  %156 = vmatprep.subr.mxu0 0.0
  %157 = vmatpush2.msra.mxu0 0.0
  %158 = vmatprep.subr.mxu0 0.0
  %159 = vmatpush2.msra.mxu0 0.0
  %160 = vmatprep.subr.mxu0 0.0
  %161 = vmatpush2.msra.mxu0 0.0
  %162 = vmatprep.subr.mxu0 0.0
  %163 = vmatpush2.msra.mxu0 0.0
  %164 = vmatprep.subr.mxu0 0.0
  %165 = vmatpush2.msra.mxu0 0.0
  %166 = vmatprep.subr.mxu0 0.0
  %167 = vmatpush2.msra.mxu0 0.0
  %168 = vmatprep.mubr.f32.mxu0 0.0
  %169 = vmatmul.mubr.f32.gmra.mxu0 %v57
  %v170 = vpop.f32.mrf.mxu0
  %v171 = vadd.f32 %v53, %v170
  %v172 = vpop.f32.mrf.mxu0
  %173 = vmatprep.mubr.f32.mxu0 0.0
  %174 = vmatmul.mubr.f32.gmra.mxu0 %v60
  %v175 = vpop.f32.mrf.mxu0
  %v176 = vadd.f32 %v53, %v175
  %v177 = vpop.f32.mrf.mxu0
  %178 = vmatprep.mubr.f32.mxu0 0.0
  %179 = vmatmul.mubr.f32.gmra.mxu0 %v63
  %v180 = vpop.f32.mrf.mxu0
  %v181 = vadd.f32 %v53, %v180
  %v182 = vpop.f32.mrf.mxu0
  %183 = vmatprep.mubr.f32.mxu0 0.0
  %184 = vmatmul.mubr.f32.gmra.mxu0 %v66
  %v185 = vpop.f32.mrf.mxu0
  %v186 = vadd.f32 %v53, %v185
  %v187 = vpop.f32.mrf.mxu0
  %188 = vmatprep.mubr.f32.mxu0 0.0
  %189 = vmatmul.mubr.f32.gmra.mxu0 %v69
  %v190 = vpop.f32.mrf.mxu0
  %v191 = vadd.f32 %v53, %v190
  %v192 = vpop.f32.mrf.mxu0
  %193 = vmatprep.mubr.f32.mxu0 0.0
  %194 = vmatmul.mubr.f32.gmra.mxu0 %v72
  %v195 = vpop.f32.mrf.mxu0
  %v196 = vadd.f32 %v53, %v195
  %v197 = vpop.f32.mrf.mxu0
  %198 = vmatprep.mubr.f32.mxu0 0.0
  %199 = vmatmul.mubr.f32.gmra.mxu0 %v75
  %v200 = vpop.f32.mrf.mxu0
  %v201 = vadd.f32 %v53, %v200
  %v202 = vpop.f32.mrf.mxu0
  %203 = vmatprep.mubr.f32.mxu0 0.0
  %204 = vmatmul.mubr.f32.gmra.mxu0 %v78
  %v205 = vpop.f32.mrf.mxu0
  %v206 = vadd.f32 %v53, %v205
  %v207 = vpop.f32.mrf.mxu0
  %208 = vmatprep.mubr.f32.mxu0 0.0
  %209 = vmatmul.mubr.f32.gmra.mxu0 %v81
  %v210 = vpop.f32.mrf.mxu0
  %v211 = vadd.f32 %v53, %v210
  %v212 = vpop.f32.mrf.mxu0
  %213 = vmatprep.mubr.f32.mxu0 0.0
  %214 = vmatmul.mubr.f32.gmra.mxu0 %v84
  %v215 = vpop.f32.mrf.mxu0
  %v216 = vadd.f32 %v53, %v215
  %v217 = vpop.f32.mrf.mxu0
  %218 = vmatprep.mubr.f32.mxu0 0.0
  %219 = vmatmul.mubr.f32.gmra.mxu0 %v87
  %v220 = vpop.f32.mrf.mxu0
  %v221 = vadd.f32 %v53, %v220
  %v222 = vpop.f32.mrf.mxu0
  %223 = vmatprep.mubr.f32.mxu0 0.0
  %224 = vmatmul.mubr.f32.gmra.mxu0 %v90
  %v225 = vpop.f32.mrf.mxu0
  %v226 = vadd.f32 %v53, %v225
  %v227 = vpop.f32.mrf.mxu0
  %228 = vmatprep.mubr.f32.mxu0 0.0
  %229 = vmatmul.mubr.f32.gmra.mxu0 %v93
  %v230 = vpop.f32.mrf.mxu0
  %v231 = vadd.f32 %v53, %v230
  %v232 = vpop.f32.mrf.mxu0
  %233 = vmatprep.mubr.f32.mxu0 0.0
  %234 = vmatmul.mubr.f32.gmra.mxu0 %v96
  %v235 = vpop.f32.mrf.mxu0
  %v236 = vadd.f32 %v53, %v235
  %v237 = vpop.f32.mrf.mxu0
  %238 = vmatprep.mubr.f32.mxu0 0.0
  %239 = vmatmul.mubr.f32.gmra.mxu0 %v99
  %v240 = vpop.f32.mrf.mxu0
  %v241 = vadd.f32 %v53, %v240
  %v242 = vpop.f32.mrf.mxu0
  %243 = vmatprep.mubr.f32.mxu0 0.0
  %244 = vmatmul.mubr.f32.gmra.mxu0 %v102
  %v245 = vpop.f32.mrf.mxu0
  %v246 = vadd.f32 %v53, %v245
  %v247 = vpop.f32.mrf.mxu0
  %248 = vdwg.mxu0
  %v249 = vld [vmem:[%s4] sm:$0xff]
  %v250 = vld [vmem:[%s4 + $0x8] sm:$0xff]
  %v251 = vld [vmem:[%s4 + $0x10] sm:$0xff]
  %v252 = vld [vmem:[%s4 + $0x18] sm:$0xff]
  %v253 = vld [vmem:[%s4 + $0x20] sm:$0xff]
  %v254 = vld [vmem:[%s4 + $0x28] sm:$0xff]
  %v255 = vld [vmem:[%s4 + $0x30] sm:$0xff]
  %v256 = vld [vmem:[%s4 + $0x38] sm:$0xff]
  %v257 = vld [vmem:[%s4 + $0x40] sm:$0xff]
  %v258 = vld [vmem:[%s4 + $0x48] sm:$0xff]
  %v259 = vld [vmem:[%s4 + $0x50] sm:$0xff]
  %v260 = vld [vmem:[%s4 + $0x58] sm:$0xff]
  %v261 = vld [vmem:[%s4 + $0x60] sm:$0xff]
  %v262 = vld [vmem:[%s4 + $0x68] sm:$0xff]
  %v263 = vld [vmem:[%s4 + $0x70] sm:$0xff]
  %v264 = vld [vmem:[%s4 + $0x78] sm:$0xff]
  %v265 = vld [vmem:[%s5] sm:$0xff]
  %v266 = vld [vmem:[%s5 + $0x8] sm:$0xff]
  %v267 = vld [vmem:[%s6] sm:$0x1]
  %v269 = vlaneseq
  %v270 = vshrl.u32 %v269, 7
  %v271 = vsub.s32 0, %v270
  %v272 = vrot.slane %v267, %v271
  %vm274 = vcmask 130048
  %v276 = vsel %vm274, %v249, 0
  %v279 = vsel %vm274, %v250, 0
  %v282 = vsel %vm274, %v251, 0
  %v285 = vsel %vm274, %v252, 0
  %v288 = vsel %vm274, %v253, 0
  %v291 = vsel %vm274, %v254, 0
  %v294 = vsel %vm274, %v255, 0
  %v297 = vsel %vm274, %v256, 0
  %v300 = vsel %vm274, %v257, 0
  %v303 = vsel %vm274, %v258, 0
  %v306 = vsel %vm274, %v259, 0
  %v309 = vsel %vm274, %v260, 0
  %v312 = vsel %vm274, %v261, 0
  %v315 = vsel %vm274, %v262, 0
  %v318 = vsel %vm274, %v263, 0
  %v321 = vsel %vm274, %v264, 0
  %323 = vmatprep.subr.mxu0 0.0
  %324 = vmatpush1.msra.mxu0 0.0
  %325 = vmatprep.subr.mxu0 0.0
  %326 = vmatpush1.msra.mxu0 0.0
  %327 = vmatprep.subr.mxu0 0.0
  %328 = vmatpush1.msra.mxu0 0.0
  %329 = vmatprep.subr.mxu0 0.0
  %330 = vmatpush1.msra.mxu0 0.0
  %331 = vmatprep.subr.mxu0 0.0
  %332 = vmatpush1.msra.mxu0 0.0
  %333 = vmatprep.subr.mxu0 0.0
  %334 = vmatpush1.msra.mxu0 0.0
  %335 = vmatprep.subr.mxu0 0.0
  %336 = vmatpush1.msra.mxu0 0.0
  %337 = vmatprep.subr.mxu0 0.0
  %338 = vmatpush1.msra.mxu0 0.0
  %339 = vmatprep.subr.mxu0 0.0
  %340 = vmatpush1.msra.mxu0 0.0
  %341 = vmatprep.subr.mxu0 0.0
  %342 = vmatpush1.msra.mxu0 0.0
  %343 = vmatprep.subr.mxu0 0.0
  %344 = vmatpush1.msra.mxu0 0.0
  %345 = vmatprep.subr.mxu0 0.0
  %346 = vmatpush1.msra.mxu0 0.0
  %347 = vmatprep.subr.mxu0 0.0
  %348 = vmatpush1.msra.mxu0 0.0
  %349 = vmatprep.subr.mxu0 0.0
  %350 = vmatpush1.msra.mxu0 0.0
  %351 = vmatprep.subr.mxu0 0.0
  %352 = vmatpush1.msra.mxu0 %v266
  %353 = vmatprep.subr.mxu0 0.0
  %354 = vmatpush1.msra.mxu0 %v265
  %355 = vmatprep.subr.mxu0 0.0
  %356 = vmatpush2.msra.mxu0 0.0
  %357 = vmatprep.subr.mxu0 0.0
  %358 = vmatpush2.msra.mxu0 0.0
  %359 = vmatprep.subr.mxu0 0.0
  %360 = vmatpush2.msra.mxu0 0.0
  %361 = vmatprep.subr.mxu0 0.0
  %362 = vmatpush2.msra.mxu0 0.0
  %363 = vmatprep.subr.mxu0 0.0
  %364 = vmatpush2.msra.mxu0 0.0
  %365 = vmatprep.subr.mxu0 0.0
  %366 = vmatpush2.msra.mxu0 0.0
  %367 = vmatprep.subr.mxu0 0.0
  %368 = vmatpush2.msra.mxu0 0.0
  %369 = vmatprep.subr.mxu0 0.0
  %370 = vmatpush2.msra.mxu0 0.0
  %371 = vmatprep.subr.mxu0 0.0
  %372 = vmatpush2.msra.mxu0 0.0
  %373 = vmatprep.subr.mxu0 0.0
  %374 = vmatpush2.msra.mxu0 0.0
  %375 = vmatprep.subr.mxu0 0.0
  %376 = vmatpush2.msra.mxu0 0.0
  %377 = vmatprep.subr.mxu0 0.0
  %378 = vmatpush2.msra.mxu0 0.0
  %379 = vmatprep.subr.mxu0 0.0
  %380 = vmatpush2.msra.mxu0 0.0
  %381 = vmatprep.subr.mxu0 0.0
  %382 = vmatpush2.msra.mxu0 0.0
  %383 = vmatprep.subr.mxu0 0.0
  %384 = vmatpush2.msra.mxu0 0.0
  %385 = vmatprep.subr.mxu0 0.0
  %386 = vmatpush2.msra.mxu0 0.0
  %387 = vmatprep.mubr.f32.mxu0 0.0
  %388 = vmatmul.mubr.f32.gmra.mxu0 %v276
  %v389 = vpop.f32.mrf.mxu0
  %v390 = vadd.f32 %v272, %v389
  %v391 = vpop.f32.mrf.mxu0
  %392 = vmatprep.mubr.f32.mxu0 0.0
  %393 = vmatmul.mubr.f32.gmra.mxu0 %v279
  %v394 = vpop.f32.mrf.mxu0
  %v395 = vadd.f32 %v272, %v394
  %v396 = vpop.f32.mrf.mxu0
  %397 = vmatprep.mubr.f32.mxu0 0.0
  %398 = vmatmul.mubr.f32.gmra.mxu0 %v282
  %v399 = vpop.f32.mrf.mxu0
  %v400 = vadd.f32 %v272, %v399
  %v401 = vpop.f32.mrf.mxu0
  %402 = vmatprep.mubr.f32.mxu0 0.0
  %403 = vmatmul.mubr.f32.gmra.mxu0 %v285
  %v404 = vpop.f32.mrf.mxu0
  %v405 = vadd.f32 %v272, %v404
  %v406 = vpop.f32.mrf.mxu0
  %407 = vmatprep.mubr.f32.mxu0 0.0
  %408 = vmatmul.mubr.f32.gmra.mxu0 %v288
  %v409 = vpop.f32.mrf.mxu0
  %v410 = vadd.f32 %v272, %v409
  %v411 = vpop.f32.mrf.mxu0
  %412 = vmatprep.mubr.f32.mxu0 0.0
  %413 = vmatmul.mubr.f32.gmra.mxu0 %v291
  %v414 = vpop.f32.mrf.mxu0
  %v415 = vadd.f32 %v272, %v414
  %v416 = vpop.f32.mrf.mxu0
  %417 = vmatprep.mubr.f32.mxu0 0.0
  %418 = vmatmul.mubr.f32.gmra.mxu0 %v294
  %v419 = vpop.f32.mrf.mxu0
  %v420 = vadd.f32 %v272, %v419
  %v421 = vpop.f32.mrf.mxu0
  %422 = vmatprep.mubr.f32.mxu0 0.0
  %423 = vmatmul.mubr.f32.gmra.mxu0 %v297
  %v424 = vpop.f32.mrf.mxu0
  %v425 = vadd.f32 %v272, %v424
  %v426 = vpop.f32.mrf.mxu0
  %427 = vmatprep.mubr.f32.mxu0 0.0
  %428 = vmatmul.mubr.f32.gmra.mxu0 %v300
  %v429 = vpop.f32.mrf.mxu0
  %v430 = vadd.f32 %v272, %v429
  %v431 = vpop.f32.mrf.mxu0
  %432 = vmatprep.mubr.f32.mxu0 0.0
  %433 = vmatmul.mubr.f32.gmra.mxu0 %v303
  %v434 = vpop.f32.mrf.mxu0
  %v435 = vadd.f32 %v272, %v434
  %v436 = vpop.f32.mrf.mxu0
  %437 = vmatprep.mubr.f32.mxu0 0.0
  %438 = vmatmul.mubr.f32.gmra.mxu0 %v306
  %v439 = vpop.f32.mrf.mxu0
  %v440 = vadd.f32 %v272, %v439
  %v441 = vpop.f32.mrf.mxu0
  %442 = vmatprep.mubr.f32.mxu0 0.0
  %443 = vmatmul.mubr.f32.gmra.mxu0 %v309
  %v444 = vpop.f32.mrf.mxu0
  %v445 = vadd.f32 %v272, %v444
  %v446 = vpop.f32.mrf.mxu0
  %447 = vmatprep.mubr.f32.mxu0 0.0
  %448 = vmatmul.mubr.f32.gmra.mxu0 %v312
  %v449 = vpop.f32.mrf.mxu0
  %v450 = vadd.f32 %v272, %v449
  %v451 = vpop.f32.mrf.mxu0
  %452 = vmatprep.mubr.f32.mxu0 0.0
  %453 = vmatmul.mubr.f32.gmra.mxu0 %v315
  %v454 = vpop.f32.mrf.mxu0
  %v455 = vadd.f32 %v272, %v454
  %v456 = vpop.f32.mrf.mxu0
  %457 = vmatprep.mubr.f32.mxu0 0.0
  %458 = vmatmul.mubr.f32.gmra.mxu0 %v318
  %v459 = vpop.f32.mrf.mxu0
  %v460 = vadd.f32 %v272, %v459
  %v461 = vpop.f32.mrf.mxu0
  %462 = vmatprep.mubr.f32.mxu0 0.0
  %463 = vmatmul.mubr.f32.gmra.mxu0 %v321
  %v464 = vpop.f32.mrf.mxu0
  %v465 = vadd.f32 %v272, %v464
  %v466 = vpop.f32.mrf.mxu0
  %467 = vdwg.mxu0
  %s468 = sld [smem:[#allocation2]]
  %v469 = vstv %s468
  %v470 = vmul.f32 %v469, 1.442695
  %v471 = vpow.pop %v470
  %s472 = vtos %v471
  %v473 = vmul.f32 %v171, %v171
  %v474 = vmul.f32 %v176, %v176
  %v475 = vmul.f32 %v181, %v181
  %v476 = vmul.f32 %v186, %v186
  %v477 = vmul.f32 %v191, %v191
  %v478 = vmul.f32 %v196, %v196
  %v479 = vmul.f32 %v201, %v201
  %v480 = vmul.f32 %v206, %v206
  %v481 = vmul.f32 %v211, %v211
  %v482 = vmul.f32 %v216, %v216
  %v483 = vmul.f32 %v221, %v221
  %v484 = vmul.f32 %v226, %v226
  %v485 = vmul.f32 %v231, %v231
  %v486 = vmul.f32 %v236, %v236
  %v487 = vmul.f32 %v241, %v241
  %v488 = vmul.f32 %v246, %v246
  %vm489 = vcmask 261120
  %v490 = vsel %vm489, %v473, 0.0
  %491 = vadd.xlane.f32.xlu0 %v490
  %v492 = vpop.xlane.xlu0 %491
  %v493 = vsel %vm489, %v474, 0.0
  %494 = vadd.xlane.f32.xlu0 %v493
  %v495 = vpop.xlane.xlu0 %494
  %v496 = vsel %vm489, %v475, 0.0
  %497 = vadd.xlane.f32.xlu0 %v496
  %v498 = vpop.xlane.xlu0 %497
  %v499 = vsel %vm489, %v476, 0.0
  %500 = vadd.xlane.f32.xlu0 %v499
  %v501 = vpop.xlane.xlu0 %500
  %v502 = vsel %vm489, %v477, 0.0
  %503 = vadd.xlane.f32.xlu0 %v502
  %v504 = vpop.xlane.xlu0 %503
  %v505 = vsel %vm489, %v478, 0.0
  %506 = vadd.xlane.f32.xlu0 %v505
  %v507 = vpop.xlane.xlu0 %506
  %v508 = vsel %vm489, %v479, 0.0
  %509 = vadd.xlane.f32.xlu0 %v508
  %v510 = vpop.xlane.xlu0 %509
  %v511 = vsel %vm489, %v480, 0.0
  %512 = vadd.xlane.f32.xlu0 %v511
  %v513 = vpop.xlane.xlu0 %512
  %v514 = vsel %vm489, %v481, 0.0
  %515 = vadd.xlane.f32.xlu0 %v514
  %v516 = vpop.xlane.xlu0 %515
  %v517 = vsel %vm489, %v482, 0.0
  %518 = vadd.xlane.f32.xlu0 %v517
  %v519 = vpop.xlane.xlu0 %518
  %v520 = vsel %vm489, %v483, 0.0
  %521 = vadd.xlane.f32.xlu0 %v520
  %v522 = vpop.xlane.xlu0 %521
  %v523 = vsel %vm489, %v484, 0.0
  %524 = vadd.xlane.f32.xlu0 %v523
  %v525 = vpop.xlane.xlu0 %524
  %v526 = vsel %vm489, %v485, 0.0
  %527 = vadd.xlane.f32.xlu0 %v526
  %v528 = vpop.xlane.xlu0 %527
  %v529 = vsel %vm489, %v486, 0.0
  %530 = vadd.xlane.f32.xlu0 %v529
  %v531 = vpop.xlane.xlu0 %530
  %v532 = vsel %vm489, %v487, 0.0
  %533 = vadd.xlane.f32.xlu0 %v532
  %v534 = vpop.xlane.xlu0 %533
  %v535 = vsel %vm489, %v488, 0.0
  %536 = vadd.xlane.f32.xlu0 %v535
  %v537 = vpop.xlane.xlu0 %536
  %v538 = vmax.f32 %v492, 1e-30
  %v539 = vmax.f32 %v495, 1e-30
  %v540 = vmax.f32 %v498, 1e-30
  %v541 = vmax.f32 %v501, 1e-30
  %v542 = vmax.f32 %v504, 1e-30
  %v543 = vmax.f32 %v507, 1e-30
  %v544 = vmax.f32 %v510, 1e-30
  %v545 = vmax.f32 %v513, 1e-30
  %v546 = vmax.f32 %v516, 1e-30
  %v547 = vmax.f32 %v519, 1e-30
  %v548 = vmax.f32 %v522, 1e-30
  %v549 = vmax.f32 %v525, 1e-30
  %v550 = vmax.f32 %v528, 1e-30
  %v551 = vmax.f32 %v531, 1e-30
  %v552 = vmax.f32 %v534, 1e-30
  %v553 = vmax.f32 %v537, 1e-30
  %v554 = vrsqrt.pop %v538
  %v555 = vrsqrt.pop %v539
  %v556 = vrsqrt.pop %v540
  %v557 = vrsqrt.pop %v541
  %v558 = vrsqrt.pop %v542
  %v559 = vrsqrt.pop %v543
  %v560 = vrsqrt.pop %v544
  %v561 = vrsqrt.pop %v545
  %v562 = vrsqrt.pop %v546
  %v563 = vrsqrt.pop %v547
  %v564 = vrsqrt.pop %v548
  %v565 = vrsqrt.pop %v549
  %v566 = vrsqrt.pop %v550
  %v567 = vrsqrt.pop %v551
  %v568 = vrsqrt.pop %v552
  %v569 = vrsqrt.pop %v553
  %v570 = vmul.f32 %v390, %v390
  %v571 = vmul.f32 %v395, %v395
  %v572 = vmul.f32 %v400, %v400
  %v573 = vmul.f32 %v405, %v405
  %v574 = vmul.f32 %v410, %v410
  %v575 = vmul.f32 %v415, %v415
  %v576 = vmul.f32 %v420, %v420
  %v577 = vmul.f32 %v425, %v425
  %v578 = vmul.f32 %v430, %v430
  %v579 = vmul.f32 %v435, %v435
  %v580 = vmul.f32 %v440, %v440
  %v581 = vmul.f32 %v445, %v445
  %v582 = vmul.f32 %v450, %v450
  %v583 = vmul.f32 %v455, %v455
  %v584 = vmul.f32 %v460, %v460
  %v585 = vmul.f32 %v465, %v465
  %v586 = vsel %vm489, %v570, 0.0
  %587 = vadd.xlane.f32.xlu0 %v586
  %v588 = vpop.xlane.xlu0 %587
  %v589 = vsel %vm489, %v571, 0.0
  %590 = vadd.xlane.f32.xlu0 %v589
  %v591 = vpop.xlane.xlu0 %590
  %v592 = vsel %vm489, %v572, 0.0
  %593 = vadd.xlane.f32.xlu0 %v592
  %v594 = vpop.xlane.xlu0 %593
  %v595 = vsel %vm489, %v573, 0.0
  %596 = vadd.xlane.f32.xlu0 %v595
  %v597 = vpop.xlane.xlu0 %596
  %v598 = vsel %vm489, %v574, 0.0
  %599 = vadd.xlane.f32.xlu0 %v598
  %v600 = vpop.xlane.xlu0 %599
  %v601 = vsel %vm489, %v575, 0.0
  %602 = vadd.xlane.f32.xlu0 %v601
  %v603 = vpop.xlane.xlu0 %602
  %v604 = vsel %vm489, %v576, 0.0
  %605 = vadd.xlane.f32.xlu0 %v604
  %v606 = vpop.xlane.xlu0 %605
  %v607 = vsel %vm489, %v577, 0.0
  %608 = vadd.xlane.f32.xlu0 %v607
  %v609 = vpop.xlane.xlu0 %608
  %v610 = vsel %vm489, %v578, 0.0
  %611 = vadd.xlane.f32.xlu0 %v610
  %v612 = vpop.xlane.xlu0 %611
  %v613 = vsel %vm489, %v579, 0.0
  %614 = vadd.xlane.f32.xlu0 %v613
  %v615 = vpop.xlane.xlu0 %614
  %v616 = vsel %vm489, %v580, 0.0
  %617 = vadd.xlane.f32.xlu0 %v616
  %v618 = vpop.xlane.xlu0 %617
  %v619 = vsel %vm489, %v581, 0.0
  %620 = vadd.xlane.f32.xlu0 %v619
  %v621 = vpop.xlane.xlu0 %620
  %v622 = vsel %vm489, %v582, 0.0
  %623 = vadd.xlane.f32.xlu0 %v622
  %v624 = vpop.xlane.xlu0 %623
  %v625 = vsel %vm489, %v583, 0.0
  %626 = vadd.xlane.f32.xlu0 %v625
  %v627 = vpop.xlane.xlu0 %626
  %v628 = vsel %vm489, %v584, 0.0
  %629 = vadd.xlane.f32.xlu0 %v628
  %v630 = vpop.xlane.xlu0 %629
  %v631 = vsel %vm489, %v585, 0.0
  %632 = vadd.xlane.f32.xlu0 %v631
  %v633 = vpop.xlane.xlu0 %632
  %v634 = vmax.f32 %v588, 1e-30
  %v635 = vmax.f32 %v591, 1e-30
  %v636 = vmax.f32 %v594, 1e-30
  %v637 = vmax.f32 %v597, 1e-30
  %v638 = vmax.f32 %v600, 1e-30
  %v639 = vmax.f32 %v603, 1e-30
  %v640 = vmax.f32 %v606, 1e-30
  %v641 = vmax.f32 %v609, 1e-30
  %v642 = vmax.f32 %v612, 1e-30
  %v643 = vmax.f32 %v615, 1e-30
  %v644 = vmax.f32 %v618, 1e-30
  %v645 = vmax.f32 %v621, 1e-30
  %v646 = vmax.f32 %v624, 1e-30
  %v647 = vmax.f32 %v627, 1e-30
  %v648 = vmax.f32 %v630, 1e-30
  %v649 = vmax.f32 %v633, 1e-30
  %v650 = vrsqrt.pop %v634
  %v651 = vrsqrt.pop %v635
  %v652 = vrsqrt.pop %v636
  %v653 = vrsqrt.pop %v637
  %v654 = vrsqrt.pop %v638
  %v655 = vrsqrt.pop %v639
  %v656 = vrsqrt.pop %v640
  %v657 = vrsqrt.pop %v641
  %v658 = vrsqrt.pop %v642
  %v659 = vrsqrt.pop %v643
  %v660 = vrsqrt.pop %v644
  %v661 = vrsqrt.pop %v645
  %v662 = vrsqrt.pop %v646
  %v663 = vrsqrt.pop %v647
  %v664 = vrsqrt.pop %v648
  %v665 = vrsqrt.pop %v649
  %v666 = vstv %s472
  %v667 = vmul.f32 %v554, %v666
  %v668 = vmul.f32 %v555, %v666
  %v669 = vmul.f32 %v556, %v666
  %v670 = vmul.f32 %v557, %v666
  %v671 = vmul.f32 %v558, %v666
  %v672 = vmul.f32 %v559, %v666
  %v673 = vmul.f32 %v560, %v666
  %v674 = vmul.f32 %v561, %v666
  %v675 = vmul.f32 %v562, %v666
  %v676 = vmul.f32 %v563, %v666
  %v677 = vmul.f32 %v564, %v666
  %v678 = vmul.f32 %v565, %v666
  %v679 = vmul.f32 %v566, %v666
  %v680 = vmul.f32 %v567, %v666
  %v681 = vmul.f32 %v568, %v666
  %v682 = vmul.f32 %v569, %v666
  %v683 = vmul.f32 %v171, %v667
  %v684 = vmul.f32 %v176, %v668
  %v685 = vmul.f32 %v181, %v669
  %v686 = vmul.f32 %v186, %v670
  %v687 = vmul.f32 %v191, %v671
  %v688 = vmul.f32 %v196, %v672
  %v689 = vmul.f32 %v201, %v673
  %v690 = vmul.f32 %v206, %v674
  %v691 = vmul.f32 %v211, %v675
  %v692 = vmul.f32 %v216, %v676
  %v693 = vmul.f32 %v221, %v677
  %v694 = vmul.f32 %v226, %v678
  %v695 = vmul.f32 %v231, %v679
  %v696 = vmul.f32 %v236, %v680
  %v697 = vmul.f32 %v241, %v681
  %v698 = vmul.f32 %v246, %v682
  %v699 = vmul.f32 %v390, %v650
  %v700 = vmul.f32 %v395, %v651
  %v701 = vmul.f32 %v400, %v652
  %v702 = vmul.f32 %v405, %v653
  %v703 = vmul.f32 %v410, %v654
  %v704 = vmul.f32 %v415, %v655
  %v705 = vmul.f32 %v420, %v656
  %v706 = vmul.f32 %v425, %v657
  %v707 = vmul.f32 %v430, %v658
  %v708 = vmul.f32 %v435, %v659
  %v709 = vmul.f32 %v440, %v660
  %v710 = vmul.f32 %v445, %v661
  %v711 = vmul.f32 %v450, %v662
  %v712 = vmul.f32 %v455, %v663
  %v713 = vmul.f32 %v460, %v664
  %v714 = vmul.f32 %v465, %v665
  %v716 = vsel %vm489, %v683, 0
  %v719 = vsel %vm489, %v684, 0
  %v722 = vsel %vm489, %v685, 0
  %v725 = vsel %vm489, %v686, 0
  %v728 = vsel %vm489, %v687, 0
  %v731 = vsel %vm489, %v688, 0
  %v734 = vsel %vm489, %v689, 0
  %v737 = vsel %vm489, %v690, 0
  %v740 = vsel %vm489, %v691, 0
  %v743 = vsel %vm489, %v692, 0
  %v746 = vsel %vm489, %v693, 0
  %v749 = vsel %vm489, %v694, 0
  %v752 = vsel %vm489, %v695, 0
  %v755 = vsel %vm489, %v696, 0
  %v758 = vsel %vm489, %v697, 0
  %v761 = vsel %vm489, %v698, 0
  %v764 = vsel %vm489, %v699, 0
  %v767 = vsel %vm489, %v700, 0
  %v770 = vsel %vm489, %v701, 0
  %v773 = vsel %vm489, %v702, 0
  %v776 = vsel %vm489, %v703, 0
  %v779 = vsel %vm489, %v704, 0
  %v782 = vsel %vm489, %v705, 0
  %v785 = vsel %vm489, %v706, 0
  %v788 = vsel %vm489, %v707, 0
  %v791 = vsel %vm489, %v708, 0
  %v794 = vsel %vm489, %v709, 0
  %v797 = vsel %vm489, %v710, 0
  %v800 = vsel %vm489, %v711, 0
  %v803 = vsel %vm489, %v712, 0
  %v806 = vsel %vm489, %v713, 0
  %v809 = vsel %vm489, %v714, 0
  %811 = vmatprep.subr.mxu0 0.0
  %812 = vmatpush1.xpose.msra.mxu0 %v809
  %813 = vmatprep.subr.mxu0 0.0
  %814 = vmatpush1.xpose.msra.mxu0 %v806
  %815 = vmatprep.subr.mxu0 0.0
  %816 = vmatpush1.xpose.msra.mxu0 %v803
  %817 = vmatprep.subr.mxu0 0.0
  %818 = vmatpush1.xpose.msra.mxu0 %v800
  %819 = vmatprep.subr.mxu0 0.0
  %820 = vmatpush1.xpose.msra.mxu0 %v797
  %821 = vmatprep.subr.mxu0 0.0
  %822 = vmatpush1.xpose.msra.mxu0 %v794
  %823 = vmatprep.subr.mxu0 0.0
  %824 = vmatpush1.xpose.msra.mxu0 %v791
  %825 = vmatprep.subr.mxu0 0.0
  %826 = vmatpush1.xpose.msra.mxu0 %v788
  %827 = vmatprep.subr.mxu0 0.0
  %828 = vmatpush1.xpose.msra.mxu0 %v785
  %829 = vmatprep.subr.mxu0 0.0
  %830 = vmatpush1.xpose.msra.mxu0 %v782
  %831 = vmatprep.subr.mxu0 0.0
  %832 = vmatpush1.xpose.msra.mxu0 %v779
  %833 = vmatprep.subr.mxu0 0.0
  %834 = vmatpush1.xpose.msra.mxu0 %v776
  %835 = vmatprep.subr.mxu0 0.0
  %836 = vmatpush1.xpose.msra.mxu0 %v773
  %837 = vmatprep.subr.mxu0 0.0
  %838 = vmatpush1.xpose.msra.mxu0 %v770
  %839 = vmatprep.subr.mxu0 0.0
  %840 = vmatpush1.xpose.msra.mxu0 %v767
  %841 = vmatprep.subr.mxu0 0.0
  %842 = vmatpush1.xpose.msra.mxu0 %v764
  %843 = vmatprep.subr.mxu0 0.0
  %844 = vmatpush2.xpose.msra.mxu0 0.0
  %845 = vmatprep.subr.mxu0 0.0
  %846 = vmatpush2.xpose.msra.mxu0 0.0
  %847 = vmatprep.subr.mxu0 0.0
  %848 = vmatpush2.xpose.msra.mxu0 0.0
  %849 = vmatprep.subr.mxu0 0.0
  %850 = vmatpush2.xpose.msra.mxu0 0.0
  %851 = vmatprep.subr.mxu0 0.0
  %852 = vmatpush2.xpose.msra.mxu0 0.0
  %853 = vmatprep.subr.mxu0 0.0
  %854 = vmatpush2.xpose.msra.mxu0 0.0
  %855 = vmatprep.subr.mxu0 0.0
  %856 = vmatpush2.xpose.msra.mxu0 0.0
  %857 = vmatprep.subr.mxu0 0.0
  %858 = vmatpush2.xpose.msra.mxu0 0.0
  %859 = vmatprep.subr.mxu0 0.0
  %860 = vmatpush2.xpose.msra.mxu0 0.0
  %861 = vmatprep.subr.mxu0 0.0
  %862 = vmatpush2.xpose.msra.mxu0 0.0
  %863 = vmatprep.subr.mxu0 0.0
  %864 = vmatpush2.xpose.msra.mxu0 0.0
  %865 = vmatprep.subr.mxu0 0.0
  %866 = vmatpush2.xpose.msra.mxu0 0.0
  %867 = vmatprep.subr.mxu0 0.0
  %868 = vmatpush2.xpose.msra.mxu0 0.0
  %869 = vmatprep.subr.mxu0 0.0
  %870 = vmatpush2.xpose.msra.mxu0 0.0
  %871 = vmatprep.subr.mxu0 0.0
  %872 = vmatpush2.xpose.msra.mxu0 0.0
  %873 = vmatprep.subr.mxu0 0.0
  %874 = vmatpush2.xpose.msra.mxu0 0.0
  %875 = vmatprep.mubr.f32.mxu0 0.0
  %876 = vmatmul.mubr.f32.gmra.mxu0 %v716
  %v877 = vpop.f32.mrf.mxu0
  %v878 = vadd.f32 0.0, %v877
  %v879 = vpop.f32.mrf.mxu0
  %880 = vmatprep.mubr.f32.mxu0 0.0
  %881 = vmatmul.mubr.f32.gmra.mxu0 %v719
  %v882 = vpop.f32.mrf.mxu0
  %v883 = vadd.f32 0.0, %v882
  %v884 = vpop.f32.mrf.mxu0
  %885 = vmatprep.mubr.f32.mxu0 0.0
  %886 = vmatmul.mubr.f32.gmra.mxu0 %v722
  %v887 = vpop.f32.mrf.mxu0
  %v888 = vadd.f32 0.0, %v887
  %v889 = vpop.f32.mrf.mxu0
  %890 = vmatprep.mubr.f32.mxu0 0.0
  %891 = vmatmul.mubr.f32.gmra.mxu0 %v725
  %v892 = vpop.f32.mrf.mxu0
  %v893 = vadd.f32 0.0, %v892
  %v894 = vpop.f32.mrf.mxu0
  %895 = vmatprep.mubr.f32.mxu0 0.0
  %896 = vmatmul.mubr.f32.gmra.mxu0 %v728
  %v897 = vpop.f32.mrf.mxu0
  %v898 = vadd.f32 0.0, %v897
  %v899 = vpop.f32.mrf.mxu0
  %900 = vmatprep.mubr.f32.mxu0 0.0
  %901 = vmatmul.mubr.f32.gmra.mxu0 %v731
  %v902 = vpop.f32.mrf.mxu0
  %v903 = vadd.f32 0.0, %v902
  %v904 = vpop.f32.mrf.mxu0
  %905 = vmatprep.mubr.f32.mxu0 0.0
  %906 = vmatmul.mubr.f32.gmra.mxu0 %v734
  %v907 = vpop.f32.mrf.mxu0
  %v908 = vadd.f32 0.0, %v907
  %v909 = vpop.f32.mrf.mxu0
  %910 = vmatprep.mubr.f32.mxu0 0.0
  %911 = vmatmul.mubr.f32.gmra.mxu0 %v737
  %v912 = vpop.f32.mrf.mxu0
  %v913 = vadd.f32 0.0, %v912
  %v914 = vpop.f32.mrf.mxu0
  %915 = vmatprep.mubr.f32.mxu0 0.0
  %916 = vmatmul.mubr.f32.gmra.mxu0 %v740
  %v917 = vpop.f32.mrf.mxu0
  %v918 = vadd.f32 0.0, %v917
  %v919 = vpop.f32.mrf.mxu0
  %920 = vmatprep.mubr.f32.mxu0 0.0
  %921 = vmatmul.mubr.f32.gmra.mxu0 %v743
  %v922 = vpop.f32.mrf.mxu0
  %v923 = vadd.f32 0.0, %v922
  %v924 = vpop.f32.mrf.mxu0
  %925 = vmatprep.mubr.f32.mxu0 0.0
  %926 = vmatmul.mubr.f32.gmra.mxu0 %v746
  %v927 = vpop.f32.mrf.mxu0
  %v928 = vadd.f32 0.0, %v927
  %v929 = vpop.f32.mrf.mxu0
  %930 = vmatprep.mubr.f32.mxu0 0.0
  %931 = vmatmul.mubr.f32.gmra.mxu0 %v749
  %v932 = vpop.f32.mrf.mxu0
  %v933 = vadd.f32 0.0, %v932
  %v934 = vpop.f32.mrf.mxu0
  %935 = vmatprep.mubr.f32.mxu0 0.0
  %936 = vmatmul.mubr.f32.gmra.mxu0 %v752
  %v937 = vpop.f32.mrf.mxu0
  %v938 = vadd.f32 0.0, %v937
  %v939 = vpop.f32.mrf.mxu0
  %940 = vmatprep.mubr.f32.mxu0 0.0
  %941 = vmatmul.mubr.f32.gmra.mxu0 %v755
  %v942 = vpop.f32.mrf.mxu0
  %v943 = vadd.f32 0.0, %v942
  %v944 = vpop.f32.mrf.mxu0
  %945 = vmatprep.mubr.f32.mxu0 0.0
  %946 = vmatmul.mubr.f32.gmra.mxu0 %v758
  %v947 = vpop.f32.mrf.mxu0
  %v948 = vadd.f32 0.0, %v947
  %v949 = vpop.f32.mrf.mxu0
  %950 = vmatprep.mubr.f32.mxu0 0.0
  %951 = vmatmul.mubr.f32.gmra.mxu0 %v761
  %v952 = vpop.f32.mrf.mxu0
  %v953 = vadd.f32 0.0, %v952
  %v954 = vpop.f32.mrf.mxu0
  %955 = vdwg.mxu0
  %956 = vst [vmem:[%s7] sm:$0xff] %v878
  %957 = vst [vmem:[%s7 + $0x8] sm:$0xff] %v883
  %958 = vst [vmem:[%s7 + $0x10] sm:$0xff] %v888
  %959 = vst [vmem:[%s7 + $0x18] sm:$0xff] %v893
  %960 = vst [vmem:[%s7 + $0x20] sm:$0xff] %v898
  %961 = vst [vmem:[%s7 + $0x28] sm:$0xff] %v903
  %962 = vst [vmem:[%s7 + $0x30] sm:$0xff] %v908
  %963 = vst [vmem:[%s7 + $0x38] sm:$0xff] %v913
  %964 = vst [vmem:[%s7 + $0x40] sm:$0xff] %v918
  %965 = vst [vmem:[%s7 + $0x48] sm:$0xff] %v923
  %966 = vst [vmem:[%s7 + $0x50] sm:$0xff] %v928
  %967 = vst [vmem:[%s7 + $0x58] sm:$0xff] %v933
  %968 = vst [vmem:[%s7 + $0x60] sm:$0xff] %v938
  %969 = vst [vmem:[%s7 + $0x68] sm:$0xff] %v943
  %970 = vst [vmem:[%s7 + $0x70] sm:$0xff] %v948
  %971 = vst [vmem:[%s7 + $0x78] sm:$0xff] %v953
  %972 = vmatprep.subr.mxu0 0.0
  %973 = vmatpush1.xpose.msra.mxu0 %v761
  %974 = vmatprep.subr.mxu0 0.0
  %975 = vmatpush1.xpose.msra.mxu0 %v758
  %976 = vmatprep.subr.mxu0 0.0
  %977 = vmatpush1.xpose.msra.mxu0 %v755
  %978 = vmatprep.subr.mxu0 0.0
  %979 = vmatpush1.xpose.msra.mxu0 %v752
  %980 = vmatprep.subr.mxu0 0.0
  %981 = vmatpush1.xpose.msra.mxu0 %v749
  %982 = vmatprep.subr.mxu0 0.0
  %983 = vmatpush1.xpose.msra.mxu0 %v746
  %984 = vmatprep.subr.mxu0 0.0
  %985 = vmatpush1.xpose.msra.mxu0 %v743
  %986 = vmatprep.subr.mxu0 0.0
  %987 = vmatpush1.xpose.msra.mxu0 %v740
  %988 = vmatprep.subr.mxu0 0.0
  %989 = vmatpush1.xpose.msra.mxu0 %v737
  %990 = vmatprep.subr.mxu0 0.0
  %991 = vmatpush1.xpose.msra.mxu0 %v734
  %992 = vmatprep.subr.mxu0 0.0
  %993 = vmatpush1.xpose.msra.mxu0 %v731
  %994 = vmatprep.subr.mxu0 0.0
  %995 = vmatpush1.xpose.msra.mxu0 %v728
  %996 = vmatprep.subr.mxu0 0.0
  %997 = vmatpush1.xpose.msra.mxu0 %v725
  %998 = vmatprep.subr.mxu0 0.0
  %999 = vmatpush1.xpose.msra.mxu0 %v722
  %1000 = vmatprep.subr.mxu0 0.0
  %1001 = vmatpush1.xpose.msra.mxu0 %v719
  %1002 = vmatprep.subr.mxu0 0.0
  %1003 = vmatpush1.xpose.msra.mxu0 %v716
  %1004 = vmatprep.subr.mxu0 0.0
  %1005 = vmatpush2.xpose.msra.mxu0 0.0
  %1006 = vmatprep.subr.mxu0 0.0
  %1007 = vmatpush2.xpose.msra.mxu0 0.0
  %1008 = vmatprep.subr.mxu0 0.0
  %1009 = vmatpush2.xpose.msra.mxu0 0.0
  %1010 = vmatprep.subr.mxu0 0.0
  %1011 = vmatpush2.xpose.msra.mxu0 0.0
  %1012 = vmatprep.subr.mxu0 0.0
  %1013 = vmatpush2.xpose.msra.mxu0 0.0
  %1014 = vmatprep.subr.mxu0 0.0
  %1015 = vmatpush2.xpose.msra.mxu0 0.0
  %1016 = vmatprep.subr.mxu0 0.0
  %1017 = vmatpush2.xpose.msra.mxu0 0.0
  %1018 = vmatprep.subr.mxu0 0.0
  %1019 = vmatpush2.xpose.msra.mxu0 0.0
  %1020 = vmatprep.subr.mxu0 0.0
  %1021 = vmatpush2.xpose.msra.mxu0 0.0
  %1022 = vmatprep.subr.mxu0 0.0
  %1023 = vmatpush2.xpose.msra.mxu0 0.0
  %1024 = vmatprep.subr.mxu0 0.0
  %1025 = vmatpush2.xpose.msra.mxu0 0.0
  %1026 = vmatprep.subr.mxu0 0.0
  %1027 = vmatpush2.xpose.msra.mxu0 0.0
  %1028 = vmatprep.subr.mxu0 0.0
  %1029 = vmatpush2.xpose.msra.mxu0 0.0
  %1030 = vmatprep.subr.mxu0 0.0
  %1031 = vmatpush2.xpose.msra.mxu0 0.0
  %1032 = vmatprep.subr.mxu0 0.0
  %1033 = vmatpush2.xpose.msra.mxu0 0.0
  %1034 = vmatprep.subr.mxu0 0.0
  %1035 = vmatpush2.xpose.msra.mxu0 0.0
  %1036 = vmatprep.mubr.f32.mxu0 0.0
  %1037 = vmatmul.mubr.f32.gmra.mxu0 %v764
  %v1038 = vpop.f32.mrf.mxu0
  %v1039 = vadd.f32 0.0, %v1038
  %v1040 = vpop.f32.mrf.mxu0
  %1041 = vmatprep.mubr.f32.mxu0 0.0
  %1042 = vmatmul.mubr.f32.gmra.mxu0 %v767
  %v1043 = vpop.f32.mrf.mxu0
  %v1044 = vadd.f32 0.0, %v1043
  %v1045 = vpop.f32.mrf.mxu0
  %1046 = vmatprep.mubr.f32.mxu0 0.0
  %1047 = vmatmul.mubr.f32.gmra.mxu0 %v770
  %v1048 = vpop.f32.mrf.mxu0
  %v1049 = vadd.f32 0.0, %v1048
  %v1050 = vpop.f32.mrf.mxu0
  %1051 = vmatprep.mubr.f32.mxu0 0.0
  %1052 = vmatmul.mubr.f32.gmra.mxu0 %v773
  %v1053 = vpop.f32.mrf.mxu0
  %v1054 = vadd.f32 0.0, %v1053
  %v1055 = vpop.f32.mrf.mxu0
  %1056 = vmatprep.mubr.f32.mxu0 0.0
  %1057 = vmatmul.mubr.f32.gmra.mxu0 %v776
  %v1058 = vpop.f32.mrf.mxu0
  %v1059 = vadd.f32 0.0, %v1058
  %v1060 = vpop.f32.mrf.mxu0
  %1061 = vmatprep.mubr.f32.mxu0 0.0
  %1062 = vmatmul.mubr.f32.gmra.mxu0 %v779
  %v1063 = vpop.f32.mrf.mxu0
  %v1064 = vadd.f32 0.0, %v1063
  %v1065 = vpop.f32.mrf.mxu0
  %1066 = vmatprep.mubr.f32.mxu0 0.0
  %1067 = vmatmul.mubr.f32.gmra.mxu0 %v782
  %v1068 = vpop.f32.mrf.mxu0
  %v1069 = vadd.f32 0.0, %v1068
  %v1070 = vpop.f32.mrf.mxu0
  %1071 = vmatprep.mubr.f32.mxu0 0.0
  %1072 = vmatmul.mubr.f32.gmra.mxu0 %v785
  %v1073 = vpop.f32.mrf.mxu0
  %v1074 = vadd.f32 0.0, %v1073
  %v1075 = vpop.f32.mrf.mxu0
  %1076 = vmatprep.mubr.f32.mxu0 0.0
  %1077 = vmatmul.mubr.f32.gmra.mxu0 %v788
  %v1078 = vpop.f32.mrf.mxu0
  %v1079 = vadd.f32 0.0, %v1078
  %v1080 = vpop.f32.mrf.mxu0
  %1081 = vmatprep.mubr.f32.mxu0 0.0
  %1082 = vmatmul.mubr.f32.gmra.mxu0 %v791
  %v1083 = vpop.f32.mrf.mxu0
  %v1084 = vadd.f32 0.0, %v1083
  %v1085 = vpop.f32.mrf.mxu0
  %1086 = vmatprep.mubr.f32.mxu0 0.0
  %1087 = vmatmul.mubr.f32.gmra.mxu0 %v794
  %v1088 = vpop.f32.mrf.mxu0
  %v1089 = vadd.f32 0.0, %v1088
  %v1090 = vpop.f32.mrf.mxu0
  %1091 = vmatprep.mubr.f32.mxu0 0.0
  %1092 = vmatmul.mubr.f32.gmra.mxu0 %v797
  %v1093 = vpop.f32.mrf.mxu0
  %v1094 = vadd.f32 0.0, %v1093
  %v1095 = vpop.f32.mrf.mxu0
  %1096 = vmatprep.mubr.f32.mxu0 0.0
  %1097 = vmatmul.mubr.f32.gmra.mxu0 %v800
  %v1098 = vpop.f32.mrf.mxu0
  %v1099 = vadd.f32 0.0, %v1098
  %v1100 = vpop.f32.mrf.mxu0
  %1101 = vmatprep.mubr.f32.mxu0 0.0
  %1102 = vmatmul.mubr.f32.gmra.mxu0 %v803
  %v1103 = vpop.f32.mrf.mxu0
  %v1104 = vadd.f32 0.0, %v1103
  %v1105 = vpop.f32.mrf.mxu0
  %1106 = vmatprep.mubr.f32.mxu0 0.0
  %1107 = vmatmul.mubr.f32.gmra.mxu0 %v806
  %v1108 = vpop.f32.mrf.mxu0
  %v1109 = vadd.f32 0.0, %v1108
  %v1110 = vpop.f32.mrf.mxu0
  %1111 = vmatprep.mubr.f32.mxu0 0.0
  %1112 = vmatmul.mubr.f32.gmra.mxu0 %v809
  %v1113 = vpop.f32.mrf.mxu0
  %v1114 = vadd.f32 0.0, %v1113
  %v1115 = vpop.f32.mrf.mxu0
  %1116 = vdwg.mxu0
  %1117 = vst [vmem:[%s8] sm:$0xff] %v1039
  %1118 = vst [vmem:[%s8 + $0x8] sm:$0xff] %v1044
  %1119 = vst [vmem:[%s8 + $0x10] sm:$0xff] %v1049
  %1120 = vst [vmem:[%s8 + $0x18] sm:$0xff] %v1054
  %1121 = vst [vmem:[%s8 + $0x20] sm:$0xff] %v1059
  %1122 = vst [vmem:[%s8 + $0x28] sm:$0xff] %v1064
  %1123 = vst [vmem:[%s8 + $0x30] sm:$0xff] %v1069
  %1124 = vst [vmem:[%s8 + $0x38] sm:$0xff] %v1074
  %1125 = vst [vmem:[%s8 + $0x40] sm:$0xff] %v1079
  %1126 = vst [vmem:[%s8 + $0x48] sm:$0xff] %v1084
  %1127 = vst [vmem:[%s8 + $0x50] sm:$0xff] %v1089
  %1128 = vst [vmem:[%s8 + $0x58] sm:$0xff] %v1094
  %1129 = vst [vmem:[%s8 + $0x60] sm:$0xff] %v1099
  %1130 = vst [vmem:[%s8 + $0x68] sm:$0xff] %v1104
  %1131 = vst [vmem:[%s8 + $0x70] sm:$0xff] %v1109
  %1132 = vst [vmem:[%s8 + $0x78] sm:$0xff] %v1114
  // Predicated region
  $region30: #{accept_forward.1} parent=0 // pred_check
    _
  $region31: #{accept_forward.1} parent=0 // pred_check_branch
    %1134 = sbr.rel (0) target = $region33
  $region32: #{accept_forward.1} parent=0 // pred_region
    _
  $region33: #{accept_forward.1} parent=0 // pred_fallthru
    _
  // Predicated region
  $region34: #{accept_forward.1} parent=0 // pred_check
    _
  $region35: #{accept_forward.1} parent=0 // pred_check_branch
    %1136 = sbr.rel (0) target = $region37
  $region36: #{accept_forward.1} parent=0 // pred_region
    _
  $region37: #{accept_forward.1} parent=0 // pred_fallthru
    _
  // Predicated region
  $region38: #{accept_forward.1} parent=0 // pred_check
    _
  $region39: #{accept_forward.1} parent=0 // pred_check_branch
    %1138 = sbr.rel (0) target = $region41
  $region40: #{accept_forward.1} parent=0 // pred_region
    _
  $region41: #{accept_forward.1} parent=0 // pred_fallthru
    _
  // Predicated region
  $region42: #{accept_forward.1} parent=0 // pred_check
    _
  $region43: #{accept_forward.1} parent=0 // pred_check_branch
    %1140 = sbr.rel (0) target = $region45
  $region44: #{accept_forward.1} parent=0 // pred_region
    _
  $region45: #{accept_forward.1} parent=0 // pred_fallthru
    _

</llo_original>
